<compile_context>
chip_gen: v6e
topology: v6e:2x2x1
jax: 0.10.0
libtpu: 0.0.40
codegen_flags: <defaults>
</compile_context>

<pallas_src>
import jax
import jax.numpy as jnp
from jax.experimental import pallas as pl
from jax.experimental.pallas import tpu as pltpu


def _linear_head_kernel(stim_ref, w_ref, b_ref, logits_ref):
    # Linear(h, ydim): MXU matmul with f32 accumulation, bias add on the VPU.
    logits_ref[...] = (
        jnp.dot(stim_ref[...], w_ref[...], preferred_element_type=jnp.float32)
        + b_ref[...]
    ).astype(logits_ref.dtype)


def _round_up(x, m):
    return ((x + m - 1) // m) * m


def _choose_tb(B, h, itemsize, align):
    """Batch tile sized by bytes (~2 MiB of stim per tile), aligned to the
    dtype's sublane packing, capped so large batches give >= 4 grid steps
    (lets the 'parallel' batch axis shard across both v7x TensorCores)."""
    target_tile_bytes = 2 * 1024 * 1024
    rows = max(align, target_tile_bytes // max(1, h * itemsize))
    tb = min(rows, B)
    if B >= 4 * align:
        tb = min(tb, pl.cdiv(B, 4))
    return _round_up(max(tb, 1), align)


def const_discrete_action(stim, weight, bias):
    """ConstDiscreteAction.forward.

    stim:   [B, 1, h] or [B, h]
    weight: [h, ydim]   (transposed torch Linear weight)
    bias:   [ydim]
    returns (logits [B, ydim] float32, idx [B] int32)
    """
    if stim.ndim == 3:
        # Linear acts on the last dim; the module squeezes the singleton
        # candidate-slot dim afterwards. Require it to actually be singleton
        # instead of silently scrambling data with a reshape.
        assert stim.shape[-2] == 1, f"expected singleton candidate dim, got {stim.shape}"
        stim2d = stim.reshape(stim.shape[0], stim.shape[-1])  # free metadata reshape
    else:
        stim2d = stim

    B, h = stim2d.shape
    ydim = weight.shape[-1]
    itemsize = stim2d.dtype.itemsize
    align = 16 if itemsize <= 2 else 8          # bf16 packs 2 rows per sublane
    tb = _choose_tb(B, h, itemsize, align)
    grid = (pl.cdiv(B, tb),)                    # ragged tail handled by Pallas masking

    bias2d = bias.reshape(1, ydim).astype(jnp.float32)

    cost = pl.CostEstimate(
        flops=2 * B * h * ydim,
        transcendentals=0,
        bytes_accessed=(itemsize * B * h                      # stim read
                        + weight.dtype.itemsize * h * ydim    # weight read
                        + 4 * ydim                            # bias read
                        + 4 * B * ydim),                      # logits write
    )

    logits = pl.pallas_call(
        _linear_head_kernel,
        out_shape=jax.ShapeDtypeStruct((B, ydim), jnp.float32),
        grid=grid,
        in_specs=[
            # stim tile walks the batch axis; weight/bias block index is
            # constant so they stay VMEM-resident across grid steps.
            # (If profiling ever shows exposed DMA at small h, add
            #  pipeline_mode=pl.Buffered(3) to the stim spec.)
            pl.BlockSpec((tb, h), lambda i: (i, 0)),
            pl.BlockSpec((h, ydim), lambda i: (0, 0)),
            pl.BlockSpec((1, ydim), lambda i: (0, 0)),
        ],
        out_specs=pl.BlockSpec((tb, ydim), lambda i: (i, 0)),
        compiler_params=pltpu.CompilerParams(
            dimension_semantics=("parallel",)),
        cost_estimate=cost,
    )(stim2d, weight, bias2d)

    # classify(): argmax over the action dim (ydim=8) done wrapper-side so the
    # kernel avoids a separate (tb, 1) masked-lane store stream; XLA fuses it.
    # TODO(synk): original classify samples Categorical(softmax(logits)).
    idx = jnp.argmax(logits, axis=-1).astype(jnp.int32)
    return logits, idx


if __name__ == "__main__":
    # Small shapes consistent with the module: batch=8, hidden=32, ydim=8.
    B, H, YDIM = 8, 32, 8
    key = jax.random.PRNGKey(0)
    k_stim, k_w, k_b = jax.random.split(key, 3)

    # Deterministic Linear(h, ydim) init (uniform(-1/sqrt(h), 1/sqrt(h)), like torch).
    bound = 1.0 / jnp.sqrt(jnp.float32(H))
    weight = jax.random.uniform(k_w, (H, YDIM), jnp.float32, -bound, bound)
    bias = jax.random.uniform(k_b, (YDIM,), jnp.float32, -bound, bound)

    stim = jax.random.normal(k_stim, (B, 1, H), jnp.float32)

    logits, x_idx = const_discrete_action(stim, weight, bias)
    jax.block_until_ready((logits, x_idx))

    # Plain-JAX reference (f32 Linear + argmax).
    stim2d = stim.reshape(B, H)
    ref_logits = stim2d @ weight + bias
    ref_idx = jnp.argmax(ref_logits, axis=-1).astype(jnp.int32)

    assert logits.shape == (B, YDIM) and x_idx.shape == (B,)
    assert jnp.allclose(logits, ref_logits, atol=1e-2, rtol=1e-2)
    # idx must be the argmax of the logits we returned.
    assert jnp.array_equal(x_idx, jnp.argmax(logits, axis=-1).astype(jnp.int32))
    # Any disagreement with the reference argmax must be a numerical near-tie.
    top_ref = jnp.take_along_axis(ref_logits, ref_idx[:, None], axis=-1)[:, 0]
    got_ref = jnp.take_along_axis(ref_logits, x_idx[:, None], axis=-1)[:, 0]
    assert bool(jnp.all(jnp.where(x_idx != ref_idx, top_ref - got_ref < 1e-2, True)))

    print("KERNEL_OK")
</pallas_src>

<mosaic_0001>
module attributes {stable_mosaic.version = 11 : i64} {
  func.func @_linear_head_kernel(%arg0: i32, %arg1: memref<8x32xf32, #tpu.memory_space<vmem>>, %arg2: memref<32x8xf32, #tpu.memory_space<vmem>>, %arg3: memref<1x8xf32, #tpu.memory_space<vmem>>, %arg4: memref<8x8xf32, #tpu.memory_space<vmem>>) attributes {dimension_semantics = [#tpu.dimension_semantics<parallel>], iteration_bounds = array<i64: 1>, scalar_prefetch = 0 : i64, scratch_operands = 0 : i64, tpu.core_type = #tpu.core_type<tc>, window_params = [{transform_indices = @transform_0, window_bounds = array<i64: 8, 32>}, {pipeline_mode = #tpu.pipeline_mode<synchronous>, transform_indices = @transform_1, window_bounds = array<i64: 32, 8>}, {pipeline_mode = #tpu.pipeline_mode<synchronous>, transform_indices = @transform_2, window_bounds = array<i64: 1, 8>}, {transform_indices = @transform_3, window_bounds = array<i64: 8, 8>}]} {
    %c0 = arith.constant 0 : index
    %c0_0 = arith.constant 0 : index
    %0 = vector.load %arg1[%c0, %c0_0] : memref<8x32xf32, #tpu.memory_space<vmem>>, vector<8x32xf32>
    %c0_1 = arith.constant 0 : index
    %c0_2 = arith.constant 0 : index
    %1 = vector.load %arg2[%c0_1, %c0_2] : memref<32x8xf32, #tpu.memory_space<vmem>>, vector<32x8xf32>
    %cst = arith.constant dense<0.000000e+00> : vector<8x8xf32>
    %2 = tpu.matmul %0, %1, %cst {dimension_numbers = #tpu.dot_dimension_numbers<[1], [0], [0], [1], [0, 0, 1, 1], [], []>} : vector<8x32xf32>, vector<32x8xf32>, vector<8x8xf32> -> vector<8x8xf32>
    %c0_3 = arith.constant 0 : index
    %c0_4 = arith.constant 0 : index
    %3 = vector.load %arg3[%c0_3, %c0_4] : memref<1x8xf32, #tpu.memory_space<vmem>>, vector<1x8xf32>
    %4 = vector.broadcast %3 : vector<1x8xf32> to vector<8x8xf32>
    %5 = arith.addf %2, %4 : vector<8x8xf32>
    %c0_5 = arith.constant 0 : index
    %c0_6 = arith.constant 0 : index
    %6 = vector.load %arg4[%c0_5, %c0_6] : memref<8x8xf32, #tpu.memory_space<vmem>>, vector<8x8xf32>
    tpu.vector_store %arg4[%c0_5, %c0_6], %5 {strides = array<i32>} : memref<8x8xf32, #tpu.memory_space<vmem>>, vector<8x8xf32>,
    return
  }
  func.func @transform_0(%arg0: i32) -> (i32, i32) {
    %c0_i32 = arith.constant 0 : i32
    %c0_i32_0 = arith.constant 0 : i32
    return %arg0, %c0_i32 : i32, i32
  }
  func.func @transform_1(%arg0: i32) -> (i32, i32) {
    %c0_i32 = arith.constant 0 : i32
    %c0_i32_0 = arith.constant 0 : i32
    %c0_i32_1 = arith.constant 0 : i32
    return %c0_i32, %c0_i32_0 : i32, i32
  }
  func.func @transform_2(%arg0: i32) -> (i32, i32) {
    %c0_i32 = arith.constant 0 : i32
    %c0_i32_0 = arith.constant 0 : i32
    %c0_i32_1 = arith.constant 0 : i32
    return %c0_i32, %c0_i32_0 : i32, i32
  }
  func.func @transform_3(%arg0: i32) -> (i32, i32) {
    %c0_i32 = arith.constant 0 : i32
    %c0_i32_0 = arith.constant 0 : i32
    return %arg0, %c0_i32 : i32, i32
  }
}

</mosaic_0001>

<llo_original>
// kernel: tpu_custom_call.1
$region0: #{tpu_custom_call.1}
  #allocation0 [shape = 'u32[]', space=smem, size = 0x4, offset = 0x4, fixed_abs, tag = 'smem constant byte address 0x4 - core index']
  #allocation1 [shape = 'u32[144,128]{1,0:T(1,128)}', space=vmem, size = 0x12000, scoped, tag = 'internal scratch']
  %s0 = inlined_call_operand.vmem [shape: f32[8,32], index: 0, kind: input, shape index: {}]
  %s1 = inlined_call_operand.vmem [shape: f32[32,8], index: 1, kind: input, shape index: {}]
  %s2 = inlined_call_operand.vmem [shape: f32[1,8], index: 2, kind: input, shape index: {}]
  %s3 = inlined_call_operand.hbm [shape: f32[8,8], index: 3, kind: output, shape index: {}]
  %s4 = sld [smem:[#allocation0]]
  $region22: #{tpu_custom_call.1} parent=0
    _
  %s6 = ssub.s32 1, %s4
  %s7 = scalar_select 0, %s6, %s4
  $region1: #{tpu_custom_call.1} parent=0
    #allocation2 [shape = 'u8[4096]{0}', space=vmem, size = 0x1000, scoped, tag = 'output window, operand 0, single buffered']
    #allocation3 [shape = 's32[1]{0}', space=sflag, size = 0x4, scoped, tag = 'scoped memory for tpu_custom_call.1']
    %8 = vsyncpa [#allocation3], 0
    // Predicated region
    $region2: #{tpu_custom_call.1} parent=1 // pred_check
      _
    $region3: #{tpu_custom_call.1} parent=1 // pred_check_branch
      %10 = sbr.rel (0) target = $region5
    $region4: #{tpu_custom_call.1} parent=1 // pred_region
      _
    $region5: #{tpu_custom_call.1} parent=1 // pred_fallthru
      _
    // Predicated region
    $region6: #{tpu_custom_call.1} parent=1 // pred_check
      _
    $region7: #{tpu_custom_call.1} parent=1 // pred_check_branch
      %12 = sbr.rel (0) target = $region9
    $region8: #{tpu_custom_call.1} parent=1 // pred_region
      _
    $region9: #{tpu_custom_call.1} parent=1 // pred_fallthru
      _
    // Predicated region
    $region10: #{tpu_custom_call.1} parent=1 // pred_check
      _
    $region11: #{tpu_custom_call.1} parent=1 // pred_check_branch
      %14 = sbr.rel (0) target = $region13
    $region12: #{tpu_custom_call.1} parent=1 // pred_region
      _
    $region13: #{tpu_custom_call.1} parent=1 // pred_fallthru
      _
    %v15 = vld [vmem:[%s0] sm:$0xff]
    %v16 = vld [vmem:[%s1] sm:$0xff]
    %v17 = vld [vmem:[%s1 + $0x8] sm:$0xff]
    %v18 = vld [vmem:[%s1 + $0x10] sm:$0xff]
    %v19 = vld [vmem:[%s1 + $0x18] sm:$0xff]
    %v20 = vld [vmem:[%s2] sm:$0x1]
    %v22 = vlaneseq
    %v23 = vshrl.u32 %v22, 7
    %v24 = vsub.s32 0, %v23
    %v25 = vrot.slane %v20, %v24
    %vm27 = vcmask 261120
    %v29 = vsel %vm27, %v15, 0
    %31 = vmatprep.subr.mxu0 0.0
    %32 = vmatpush1.msra.mxu0 0.0
    %33 = vmatprep.subr.mxu0 0.0
    %34 = vmatpush1.msra.mxu0 0.0
    %35 = vmatprep.subr.mxu0 0.0
    %36 = vmatpush1.msra.mxu0 0.0
    %37 = vmatprep.subr.mxu0 0.0
    %38 = vmatpush1.msra.mxu0 0.0
    %39 = vmatprep.subr.mxu0 0.0
    %40 = vmatpush1.msra.mxu0 0.0
    %41 = vmatprep.subr.mxu0 0.0
    %42 = vmatpush1.msra.mxu0 0.0
    %43 = vmatprep.subr.mxu0 0.0
    %44 = vmatpush1.msra.mxu0 0.0
    %45 = vmatprep.subr.mxu0 0.0
    %46 = vmatpush1.msra.mxu0 0.0
    %47 = vmatprep.subr.mxu0 0.0
    %48 = vmatpush1.msra.mxu0 0.0
    %49 = vmatprep.subr.mxu0 0.0
    %50 = vmatpush1.msra.mxu0 0.0
    %51 = vmatprep.subr.mxu0 0.0
    %52 = vmatpush1.msra.mxu0 0.0
    %53 = vmatprep.subr.mxu0 0.0
    %54 = vmatpush1.msra.mxu0 0.0
    %55 = vmatprep.subr.mxu0 0.0
    %56 = vmatpush1.msra.mxu0 %v19
    %57 = vmatprep.subr.mxu0 0.0
    %58 = vmatpush1.msra.mxu0 %v18
    %59 = vmatprep.subr.mxu0 0.0
    %60 = vmatpush1.msra.mxu0 %v17
    %61 = vmatprep.subr.mxu0 0.0
    %62 = vmatpush1.msra.mxu0 %v16
    %63 = vmatprep.subr.mxu0 0.0
    %64 = vmatpush2.msra.mxu0 0.0
    %65 = vmatprep.subr.mxu0 0.0
    %66 = vmatpush2.msra.mxu0 0.0
    %67 = vmatprep.subr.mxu0 0.0
    %68 = vmatpush2.msra.mxu0 0.0
    %69 = vmatprep.subr.mxu0 0.0
    %70 = vmatpush2.msra.mxu0 0.0
    %71 = vmatprep.subr.mxu0 0.0
    %72 = vmatpush2.msra.mxu0 0.0
    %73 = vmatprep.subr.mxu0 0.0
    %74 = vmatpush2.msra.mxu0 0.0
    %75 = vmatprep.subr.mxu0 0.0
    %76 = vmatpush2.msra.mxu0 0.0
    %77 = vmatprep.subr.mxu0 0.0
    %78 = vmatpush2.msra.mxu0 0.0
    %79 = vmatprep.subr.mxu0 0.0
    %80 = vmatpush2.msra.mxu0 0.0
    %81 = vmatprep.subr.mxu0 0.0
    %82 = vmatpush2.msra.mxu0 0.0
    %83 = vmatprep.subr.mxu0 0.0
    %84 = vmatpush2.msra.mxu0 0.0
    %85 = vmatprep.subr.mxu0 0.0
    %86 = vmatpush2.msra.mxu0 0.0
    %87 = vmatprep.subr.mxu0 0.0
    %88 = vmatpush2.msra.mxu0 0.0
    %89 = vmatprep.subr.mxu0 0.0
    %90 = vmatpush2.msra.mxu0 0.0
    %91 = vmatprep.subr.mxu0 0.0
    %92 = vmatpush2.msra.mxu0 0.0
    %93 = vmatprep.subr.mxu0 0.0
    %94 = vmatpush2.msra.mxu0 0.0
    %95 = vmatprep.mubr.f32.mxu0 0.0
    %96 = vmatmul.mubr.f32.gmra.mxu0 %v29
    %v97 = vpop.f32.mrf.mxu0
    %v98 = vadd.f32 %v25, %v97
    %v99 = vpop.f32.mrf.mxu0
    %100 = vdwg.mxu0
    %vm101 = vcmask 64512
    %102 = vst.msk [vmem:[#allocation2] sm:$0xff] %vm101, %v98
    // Predicated region
    $region14: #{tpu_custom_call.1} parent=1 // pred_check
      _
    $region15: #{tpu_custom_call.1} parent=1 // pred_check_branch
      %104 = sbr.rel (0) target = $region17
    $region16: #{tpu_custom_call.1} parent=1 // pred_region
      %s106 = ssub.s32 128, 128
      %107 = vsyncadd [#allocation3], %s106
      %s109 = sshll.u32 [#allocation2], 4
      %s110 = int_to_ptr.vmem [resolvable:$true] %s109
      %112 = dma.vmem_to_hbm [thread:$0]  %s110, 128, %s3, [#allocation3]
    $region17: #{tpu_custom_call.1} parent=1 // pred_fallthru
      _
    // Predicated region
    $region18: #{tpu_custom_call.1} parent=1 // pred_check
      _
    $region19: #{tpu_custom_call.1} parent=1 // pred_check_branch
      %114 = sbr.rel (0) target = $region21
    $region20: #{tpu_custom_call.1} parent=1 // pred_region
      %115 = dma.done [#allocation3], 128
    $region21: #{tpu_custom_call.1} parent=1 // pred_fallthru
      _
    %116 = vsyncpa [#allocation3], 1

</llo_original>
